<compile_context>
chip_gen: v5e
topology: v5e:2x2
jax: 0.10.0
libtpu: 0.0.40
codegen_flags: <defaults>
</compile_context>

<pallas_src>
import functools

import jax
import jax.numpy as jnp
import numpy as np
from jax.experimental import pallas as pl
from jax.experimental.pallas import tpu as pltpu


def _pass1_kernel(diff_ref, q_ref, psum_ref, *, delta):
    """q = delta*|diff|^2 (written into the future output buffer) + per-tile
    sublane-group partial sums of |diff| (fully parallel grid axis)."""
    dr = diff_ref[0]                       # (tb, lanes) real plane
    di = diff_ref[1]                       # (tb, lanes) imag plane
    sq = dr * dr + di * di                 # |diff|^2
    q_ref[...] = delta * sq                # quadratic branch value (aliased in pass 2)

    l1 = jnp.sqrt(sq)                      # |diff| — only feeds the global mean
    tb, lanes = l1.shape
    # Lane-dense (8, lanes) partial sums; the one cross-lane reduce is done in
    # the wrapper, keeping this pass "parallel" (both TCs stream HBM on v7x).
    psum_ref[...] = jnp.sum(l1.reshape(tb // 8, 8, lanes), axis=0)


def _pass2_kernel(sum_ref, q_ref, out_ref, *, delta, inv_n):
    """In-place Huber selection; linear-branch mean computed from the global sum."""
    lin = delta * (sum_ref[0] * inv_n - 0.5 * delta)
    q = q_ref[...]
    # q < delta^3  <=>  |diff| < delta  (delta >= 0); no sqrt on the hot path.
    out_ref[...] = jnp.where(q < delta * delta * delta, q, lin)


def _slab_geometry(n, lanes, target_tile_bytes):
    """Lane-dense slab (rows, lanes) holding n elements + 8-aligned row tile."""
    assert lanes % 128 == 0
    rows_min = max(1, -(-n // lanes))
    # Row tile so the packed (2, tb, lanes) f32 diff tile is ~target_tile_bytes.
    tb_cap = max(8, (target_tile_bytes // (lanes * 8)) // 8 * 8)
    if rows_min <= tb_cap:
        rows = max(8, -(-rows_min // 8) * 8)
        return rows, rows, 1
    n_tiles = -(-rows_min // tb_cap)
    per = -(-rows_min // n_tiles)
    tb = -(-per // 8) * 8
    return n_tiles * tb, tb, n_tiles


@functools.partial(jax.jit, static_argnames=("delta", "lanes", "target_tile_bytes"))
def complex_huber_loss(y_true, y_pred, delta=1.0,
                       lanes=512, target_tile_bytes=4 << 20):
    """Element-wise complex Huber loss. Returns float32 with y_true's shape."""
    assert y_true.shape == y_pred.shape
    assert delta >= 0.0, "delta must be non-negative"
    n = int(np.prod(y_true.shape))
    rows, tb, n_tiles = _slab_geometry(n, lanes, target_tile_bytes)

    # Single packed operand: diff computed once by XLA; real/imag planes of one
    # f32 slab. (Mosaic has no complex dtype and complex64->f32 bitcast is
    # unsupported, so this single fused pack is the minimal-traffic option.)
    diff = y_true - y_pred
    dr = jnp.real(diff).astype(jnp.float32).reshape(-1)
    di = jnp.imag(diff).astype(jnp.float32).reshape(-1)
    pad = rows * lanes - n
    if pad:
        dr = jnp.pad(dr, (0, pad))         # padded zeros contribute 0 to sum(|diff|)
        di = jnp.pad(di, (0, pad))
    diff_packed = jnp.stack([dr, di], axis=0).reshape(2, rows, lanes)

    tile_spec = pl.BlockSpec((tb, lanes), lambda i: (i, 0))
    cparams = pltpu.CompilerParams(dimension_semantics=("parallel",),
                                   vmem_limit_bytes=32 << 20)

    # Pass 1: q = delta*|diff|^2 into the (future) output slab + per-tile
    # partial sums of |diff|.
    q, psum = pl.pallas_call(
        functools.partial(_pass1_kernel, delta=float(delta)),
        out_shape=(jax.ShapeDtypeStruct((rows, lanes), jnp.float32),
                   jax.ShapeDtypeStruct((8 * n_tiles, lanes), jnp.float32)),
        grid=(n_tiles,),
        in_specs=[pl.BlockSpec((2, tb, lanes), lambda i: (0, i, 0))],
        out_specs=(tile_spec, pl.BlockSpec((8, lanes), lambda i: (i, 0))),
        compiler_params=cparams,
    )(diff_packed)

    # Tiny tree reduce of the partial sums — the only work between the passes.
    l1_sum = jnp.sum(psum).reshape(1).astype(jnp.float32)

    # Pass 2: in-place Huber selection over the aliased q buffer.
    out_slab = pl.pallas_call(
        functools.partial(_pass2_kernel, delta=float(delta), inv_n=1.0 / n),
        out_shape=jax.ShapeDtypeStruct((rows, lanes), jnp.float32),
        grid=(n_tiles,),
        in_specs=[pl.BlockSpec(memory_space=pltpu.MemorySpace.SMEM),  # global sum scalar
                  tile_spec],
        out_specs=tile_spec,
        input_output_aliases={1: 0},       # rewrite q in place — no extra (rows,lanes) buffer
        compiler_params=cparams,
    )(l1_sum, q)

    return out_slab.reshape(-1)[:n].reshape(y_true.shape)


def _reference(y_true, y_pred, delta=1.0):
    l1 = jnp.abs(y_true - y_pred)
    return jnp.where(l1 < delta, delta * l1 ** 2,
                     jnp.mean(delta * (l1 - 0.5 * delta))).astype(jnp.float32)


if __name__ == "__main__":
    key = jax.random.PRNGKey(0)
    k1, k2, k3, k4 = jax.random.split(key, 4)
    B, D = 32, 128   # small demo shape

    y_true = (jax.random.normal(k1, (B, D), jnp.float32)
              + 1j * jax.random.normal(k2, (B, D), jnp.float32)).astype(jnp.complex64)
    y_pred = (jax.random.normal(k3, (B, D), jnp.float32)
              + 1j * jax.random.normal(k4, (B, D), jnp.float32)).astype(jnp.complex64)

    ref = _reference(y_true, y_pred, delta=1.0)

    # Small tiles -> multi-step pipelined grid exercised even at demo scale.
    out_small = complex_huber_loss(y_true, y_pred, delta=1.0,
                                   lanes=128, target_tile_bytes=8192)
    out_small = jax.block_until_ready(out_small)
    np.testing.assert_allclose(np.asarray(out_small), np.asarray(ref),
                               rtol=1e-5, atol=1e-5)

    # Default (production) tiling path.
    out_default = complex_huber_loss(y_true, y_pred, delta=1.0)
    out_default = jax.block_until_ready(out_default)
    np.testing.assert_allclose(np.asarray(out_default), np.asarray(ref),
                               rtol=1e-5, atol=1e-5)

    print("KERNEL_OK")
</pallas_src>

<mosaic_0001>
module attributes {stable_mosaic.version = 11 : i64} {
  func.func @_pass2_kernel(%arg0: i32, %arg1: memref<1xf32, #tpu.memory_space<smem>>, %arg2: memref<8x128xf32, #tpu.memory_space<vmem>>, %arg3: memref<8x128xf32, #tpu.memory_space<vmem>>) attributes {dimension_semantics = [#tpu.dimension_semantics<parallel>], iteration_bounds = array<i64: 4>, scalar_prefetch = 0 : i64, scratch_operands = 0 : i64, tpu.core_type = #tpu.core_type<tc>, window_params = [{transform_indices = @transform_0, window_bounds = array<i64: 1>}, {transform_indices = @transform_1, window_bounds = array<i64: 8, 128>}, {transform_indices = @transform_2, window_bounds = array<i64: 8, 128>}]} {
    %c0 = arith.constant 0 : index
    %0 = memref.load %arg1[%c0] : memref<1xf32, #tpu.memory_space<smem>>
    %cst = arith.constant 2.44140625E-4 : f32
    %1 = arith.mulf %0, %cst : f32
    %cst_0 = arith.constant 5.000000e-01 : f32
    %2 = arith.subf %1, %cst_0 : f32
    %cst_1 = arith.constant 1.000000e+00 : f32
    %3 = arith.mulf %cst_1, %2 : f32
    %c0_2 = arith.constant 0 : index
    %c0_3 = arith.constant 0 : index
    %4 = vector.load %arg2[%c0_2, %c0_3] : memref<8x128xf32, #tpu.memory_space<vmem>>, vector<8x128xf32>
    %cst_4 = arith.constant 1.000000e+00 : f32
    %5 = vector.broadcast %cst_4 : f32 to vector<8x128xf32>
    %6 = arith.cmpf olt, %4, %5 : vector<8x128xf32>
    %7 = vector.broadcast %3 : f32 to vector<8x128xf32>
    %8 = arith.select %6, %4, %7 : vector<8x128xi1>, vector<8x128xf32>
    %c0_5 = arith.constant 0 : index
    %c0_6 = arith.constant 0 : index
    %9 = vector.load %arg3[%c0_5, %c0_6] : memref<8x128xf32, #tpu.memory_space<vmem>>, vector<8x128xf32>
    tpu.vector_store %arg3[%c0_5, %c0_6], %8 {strides = array<i32>} : memref<8x128xf32, #tpu.memory_space<vmem>>, vector<8x128xf32>,
    return
  }
  func.func @transform_0(%arg0: i32) -> i32 {
    %c0_i32 = arith.constant 0 : i32
    %c0_i32_0 = arith.constant 0 : i32
    return %c0_i32 : i32
  }
  func.func @transform_1(%arg0: i32) -> (i32, i32) {
    %c0_i32 = arith.constant 0 : i32
    %c0_i32_0 = arith.constant 0 : i32
    return %arg0, %c0_i32 : i32, i32
  }
  func.func @transform_2(%arg0: i32) -> (i32, i32) {
    %c0_i32 = arith.constant 0 : i32
    %c0_i32_0 = arith.constant 0 : i32
    return %arg0, %c0_i32 : i32, i32
  }
}

module attributes {stable_mosaic.version = 11 : i64} {
  func.func @_pass1_kernel(%arg0: i32, %arg1: memref<2x8x128xf32, #tpu.memory_space<vmem>>, %arg2: memref<8x128xf32, #tpu.memory_space<vmem>>, %arg3: memref<8x128xf32, #tpu.memory_space<vmem>>) attributes {dimension_semantics = [#tpu.dimension_semantics<parallel>], iteration_bounds = array<i64: 4>, scalar_prefetch = 0 : i64, scratch_operands = 0 : i64, tpu.core_type = #tpu.core_type<tc>, window_params = [{transform_indices = @transform_0, window_bounds = array<i64: 2, 8, 128>}, {transform_indices = @transform_1, window_bounds = array<i64: 8, 128>}, {transform_indices = @transform_2, window_bounds = array<i64: 8, 128>}]} {
    %c0 = arith.constant 0 : index
    %c0_0 = arith.constant 0 : index
    %c0_1 = arith.constant 0 : index
    %0 = vector.load %arg1[%c0, %c0_0, %c0_1] : memref<2x8x128xf32, #tpu.memory_space<vmem>>, vector<1x8x128xf32>
    %1 = vector.shape_cast %0 : vector<1x8x128xf32> to vector<8x128xf32>
    %c1 = arith.constant 1 : index
    %c0_2 = arith.constant 0 : index
    %c0_3 = arith.constant 0 : index
    %2 = vector.load %arg1[%c1, %c0_2, %c0_3] : memref<2x8x128xf32, #tpu.memory_space<vmem>>, vector<1x8x128xf32>
    %3 = vector.shape_cast %2 : vector<1x8x128xf32> to vector<8x128xf32>
    %4 = arith.mulf %1, %1 : vector<8x128xf32>
    %5 = arith.mulf %3, %3 : vector<8x128xf32>
    %6 = arith.addf %4, %5 : vector<8x128xf32>
    %cst = arith.constant 1.000000e+00 : f32
    %7 = vector.broadcast %cst : f32 to vector<8x128xf32>
    %8 = arith.mulf %7, %6 : vector<8x128xf32>
    %c0_4 = arith.constant 0 : index
    %c0_5 = arith.constant 0 : index
    %9 = vector.load %arg2[%c0_4, %c0_5] : memref<8x128xf32, #tpu.memory_space<vmem>>, vector<8x128xf32>
    tpu.vector_store %arg2[%c0_4, %c0_5], %8 {strides = array<i32>} : memref<8x128xf32, #tpu.memory_space<vmem>>, vector<8x128xf32>,
    %10 = math.sqrt %6 : vector<8x128xf32>
    %11 = vector.shape_cast %10 : vector<8x128xf32> to vector<1x8x128xf32>
    %cst_6 = arith.constant dense<0.000000e+00> : vector<8x128xf32>
    %12 = vector.multi_reduction <add>, %11, %cst_6 [0] : vector<1x8x128xf32> to vector<8x128xf32>
    %c0_7 = arith.constant 0 : index
    %c0_8 = arith.constant 0 : index
    %13 = vector.load %arg3[%c0_7, %c0_8] : memref<8x128xf32, #tpu.memory_space<vmem>>, vector<8x128xf32>
    tpu.vector_store %arg3[%c0_7, %c0_8], %12 {strides = array<i32>} : memref<8x128xf32, #tpu.memory_space<vmem>>, vector<8x128xf32>,
    return
  }
  func.func @transform_0(%arg0: i32) -> (i32, i32, i32) {
    %c0_i32 = arith.constant 0 : i32
    %c0_i32_0 = arith.constant 0 : i32
    %c0_i32_1 = arith.constant 0 : i32
    return %c0_i32, %arg0, %c0_i32_0 : i32, i32, i32
  }
  func.func @transform_1(%arg0: i32) -> (i32, i32) {
    %c0_i32 = arith.constant 0 : i32
    %c0_i32_0 = arith.constant 0 : i32
    return %arg0, %c0_i32 : i32, i32
  }
  func.func @transform_2(%arg0: i32) -> (i32, i32) {
    %c0_i32 = arith.constant 0 : i32
    %c0_i32_0 = arith.constant 0 : i32
    return %arg0, %c0_i32 : i32, i32
  }
}

</mosaic_0001>

<llo_original>
// kernel: custom-call
$region0: #{custom-call}
  %s0 = inlined_call_operand.hbm [shape: c64[32,128], index: 0, kind: input, shape index: {}]
  %s1 = inlined_call_operand.vmem [shape: f32[32,128], index: 1, kind: output, shape index: {}]
  $region1: #{custom-call} parent=0
    #allocation0 [shape = 's32[1]{0}', space=sflag, size = 0x4, scoped, tag = 'scoped memory for custom-call']
    %2 = vsyncpa [#allocation0], 0
    %s4 = sshll.u32 %s0, 4
    %s5 = int_to_ptr.hbm [resolvable:$true] %s4
    %s6 = sshll.u32 %s1, 4
    %s7 = int_to_ptr.vmem [resolvable:$true] %s6
    %9 = dma.hbm_to_vmem [thread:$0]  %s5, 512, %s7, [#allocation0]
    %11 = dma.done [#allocation0], 512
    %12 = vsyncpa [#allocation0], 1

// kernel: custom-call.1
$region0: #{custom-call.1}
  %s0 = inlined_call_operand.hbm [shape: c64[32,128], index: 0, kind: input, shape index: {}]
  %s1 = inlined_call_operand.vmem [shape: f32[32,128], index: 1, kind: output, shape index: {}]
  %s2 = scalar_lea.hbm %s0, 32
  $region1: #{custom-call.1} parent=0
    #allocation0 [shape = 's32[1]{0}', space=sflag, size = 0x4, scoped, tag = 'scoped memory for custom-call.1']
    %3 = vsyncpa [#allocation0], 0
    %s5 = sshll.u32 %s2, 4
    %s6 = int_to_ptr.hbm [resolvable:$true] %s5
    %s7 = sshll.u32 %s1, 4
    %s8 = int_to_ptr.vmem [resolvable:$true] %s7
    %10 = dma.hbm_to_vmem [thread:$0]  %s6, 512, %s8, [#allocation0]
    %12 = dma.done [#allocation0], 512
    %13 = vsyncpa [#allocation0], 1

// kernel: complex_huber_loss.2
$region0: #{complex_huber_loss.2}
  #allocation0 [shape = 'u32[]', space=smem, size = 0x4, offset = 0x4, fixed_abs, tag = 'smem constant byte address 0x4 - core index']
  #allocation1 [shape = 'u32[72,128]{1,0:T(1,128)}', space=vmem, size = 0x9000, scoped, tag = 'internal scratch']
  %s0 = inlined_call_operand.vmem [shape: f32[2,32,128], index: 0, kind: input, shape index: {}]
  %s1 = inlined_call_operand.hbm [shape: f32[32,128], index: 1, kind: output, shape index: {0}]
  %s2 = inlined_call_operand.vmem [shape: f32[32,128], index: 2, kind: output, shape index: {1}]
  %3 = xla_tuple %s1, %s2
  %s4 = sld [smem:[#allocation0]]
  $region83: #{complex_huber_loss.2} parent=0
    _
  %s6 = ssub.s32 1, %s4
  %s7 = scalar_select 0, %s6, %s4
  $region1: #{complex_huber_loss.2} parent=0
    #allocation2 [shape = 'u8[16384]{0}', space=vmem, size = 0x4000, scoped, tag = 'input window, operand 0']
    #allocation3 [shape = 'u8[8192]{0}', space=vmem, size = 0x2000, scoped, tag = 'output window, operand 0']
    #allocation4 [shape = 's32[2]{0}', space=sflag, size = 0x8, scoped, tag = 'scoped memory for complex_huber_loss.2']
    %8 = vsyncpa [#allocation4], 0
    %s9 = scalar_lea.sflag [#allocation4], 1
    %10 = vsyncpa %s9, 0
    loop: start=0, step=1, limit=6
    $region2: #{complex_huber_loss.2} parent=1 // loop_pre_header
      _
    $region3: #{complex_huber_loss.2} parent=1 // loop_header
      %s12 = sphi 0, %s16
      %p13 = scmp.ge.s32.totalorder %s12, 6
      %s22 = sphi 0, %s24
      %s25 = sphi 0, %s22
      %s26 = sphi 0, %s25
      %s42 = sphi 0, %s26
      %s48 = sphi 0, %s50
      %s51 = sphi 0, %s48
      %s52 = sphi 0, %s51
      %s68 = sphi 0, %s52
      %s74 = sphi 0, %s76
      %s77 = sphi 0, %s74
      %s78 = sphi 0, %s77
      %s94 = sphi 0, %s78
    $region4: #{complex_huber_loss.2} parent=1 // loop_header_branch
      %15 = sbr.rel (%p13) target = $region8
    $region5: #{complex_huber_loss.2} parent=1 // loop_body
      %s17 = ssub.s32 %s12, 1
      %s18 = ssub.s32 %s12, 2
      %s19 = sadd.s32 %s12, 1
      %s20 = ssub.s32 %s12, %s19
      %p21 = scmp.eq.s32.totalorder %s20, 0
      %s23 = sadd.s32 %s22, 1
      %s24 = scalar_select %p21, %s22, %s23
      %p27 = pneg %p21
      %p28 = scmp.eq.s32.totalorder %s12, 3
      %p29 = por %p27, %p28
      %p30 = scmp.ne.s32.totalorder %s22, %s25
      %p31 = scmp.eq.s32.totalorder %s12, 0
      %p32 = por %p30, %p31
      %p33 = scmp.ne.s32.totalorder %s22, %s25
      %p34 = scmp.eq.s32.totalorder %s17, 3
      %p35 = por %p33, %p34
      %p36 = scmp.ne.s32.totalorder %s25, %s26
      %p37 = scmp.eq.s32.totalorder %s17, 0
      %p38 = por %p36, %p37
      %p39 = scmp.ne.s32.totalorder %s25, %s26
      %p40 = scmp.eq.s32.totalorder %s18, 3
      %p41 = por %p39, %p40
      %p43 = scmp.ne.s32.totalorder %s26, %s42
      %p44 = scmp.eq.s32.totalorder %s18, 0
      %p45 = por %p43, %p44
      %s46 = ssub.s32 %s12, %s19
      %p47 = scmp.eq.s32.totalorder %s46, 0
      %s49 = sadd.s32 %s48, 1
      %s50 = scalar_select %p47, %s48, %s49
      %p53 = pneg %p47
      %p54 = scmp.eq.s32.totalorder %s12, 3
      %p55 = por %p53, %p54
      %p56 = scmp.ne.s32.totalorder %s48, %s51
      %p57 = scmp.eq.s32.totalorder %s12, 0
      %p58 = por %p56, %p57
      %p59 = scmp.ne.s32.totalorder %s48, %s51
      %p60 = scmp.eq.s32.totalorder %s17, 3
      %p61 = por %p59, %p60
      %p62 = scmp.ne.s32.totalorder %s51, %s52
      %p63 = scmp.eq.s32.totalorder %s17, 0
      %p64 = por %p62, %p63
      %p65 = scmp.ne.s32.totalorder %s51, %s52
      %p66 = scmp.eq.s32.totalorder %s18, 3
      %p67 = por %p65, %p66
      %p69 = scmp.ne.s32.totalorder %s52, %s68
      %p70 = scmp.eq.s32.totalorder %s18, 0
      %p71 = por %p69, %p70
      %s72 = ssub.s32 %s12, %s19
      %p73 = scmp.eq.s32.totalorder %s72, 0
      %s75 = sadd.s32 %s74, 1
      %s76 = scalar_select %p73, %s74, %s75
      %p79 = pneg %p73
      %p80 = scmp.eq.s32.totalorder %s12, 3
      %p81 = por %p79, %p80
      %p82 = scmp.ne.s32.totalorder %s74, %s77
      %p83 = scmp.eq.s32.totalorder %s12, 0
      %p84 = por %p82, %p83
      %p85 = scmp.ne.s32.totalorder %s74, %s77
      %p86 = scmp.eq.s32.totalorder %s17, 3
      %p87 = por %p85, %p86
      %p88 = scmp.ne.s32.totalorder %s77, %s78
      %p89 = scmp.eq.s32.totalorder %s17, 0
      %p90 = por %p88, %p89
      %p91 = scmp.ne.s32.totalorder %s77, %s78
      %p92 = scmp.eq.s32.totalorder %s18, 3
      %p93 = por %p91, %p92
      %p95 = scmp.ne.s32.totalorder %s78, %s94
      %p96 = scmp.eq.s32.totalorder %s18, 0
      %p97 = por %p95, %p96
      %p98 = scmp.le.s32.totalorder 1, %s12
      %p99 = scmp.lt.s32.totalorder %s12, 5
      %p100 = pnand %p98, %p99
      %p101 = pneg %p100
      // Predicated region
      $region9: #{complex_huber_loss.2} parent=5 // pred_check
        _
      $region10: #{complex_huber_loss.2} parent=5 // pred_check_branch
        %103 = sbr.rel (%p100) target = $region12
      $region11: #{complex_huber_loss.2} parent=5 // pred_region
        %s104 = ssub.s32 %s12, 1
      $region12: #{complex_huber_loss.2} parent=5 // pred_fallthru
        _
      %p105 = scmp.lt.s32.totalorder %s12, 4
      // Predicated region
      $region13: #{complex_huber_loss.2} parent=5 // pred_check
        %p106 = pneg %p105
      $region14: #{complex_huber_loss.2} parent=5 // pred_check_branch
        %108 = sbr.rel (%p106) target = $region16
      $region15: #{complex_huber_loss.2} parent=5 // pred_region
        // Predicated region
        $region17: #{complex_huber_loss.2} parent=15 // pred_check
          %p109 = pneg %p32
        $region18: #{complex_huber_loss.2} parent=15 // pred_check_branch
          %111 = sbr.rel (%p109) target = $region20
        $region19: #{complex_huber_loss.2} parent=15 // pred_region
          %s112 = sand.u32 %s22, 1
          %s113 = sand.u32 %s22, 1
          %s114 = smul.addr %s113, 16
          %s115 = scalar_lea.vmem [#allocation2], %s114
          %s116 = smul.addr %s12, 8
          %s117 = scalar_lea.vmem %s0, %s116
          // Predicated region
          $region21: #{complex_huber_loss.2} parent=19 // pred_check
            _
          $region22: #{complex_huber_loss.2} parent=19 // pred_check_branch
            %119 = sbr.rel (0) target = $region24
          $region23: #{complex_huber_loss.2} parent=19 // pred_region
            // Predicated region
            $region25: #{complex_huber_loss.2} parent=23 // pred_check
              _
            $region26: #{complex_huber_loss.2} parent=23 // pred_check_branch
              %121 = sbr.rel (0) target = $region28
            $region27: #{complex_huber_loss.2} parent=23 // pred_region
              // Predicated region
              $region40: #{complex_huber_loss.2} parent=27 // pred_check
                _
              $region41: #{complex_huber_loss.2} parent=27 // pred_check_branch
                %139 = sbr.rel (0) target = $region43
              $region42: #{complex_huber_loss.2} parent=27 // pred_region
                loop: start=0, step=1, limit=1
                $region44: #{complex_huber_loss.2} parent=42 // loop_pre_header
                  _
                $region45: #{complex_huber_loss.2} parent=42 // loop_header
                  %s141 = sphi 0, %s145
                  %p142 = scmp.ge.s32.totalorder %s141, 1
                  %s146 = sphi %s117, %s117
                  %s147 = sphi %s115, %s115
                $region46: #{complex_huber_loss.2} parent=42 // loop_header_branch
                  %144 = sbr.rel (%p142) target = $region50
                $region47: #{complex_huber_loss.2} parent=42 // loop_body
                  %v148 = vld [vmem:[%s146] sm:$0xff]
                  %149 = vst [vmem:[%s147] sm:$0xff] %v148
                  %v150 = vld [vmem:[%s146 + $0x20] sm:$0xff]
                  %151 = vst [vmem:[%s147 + $0x8] sm:$0xff] %v150
                $region48: #{complex_huber_loss.2} parent=42 // loop_footer
                  %s145 = sadd.s32 1, %s141
                $region49: #{complex_huber_loss.2} parent=42 // loop_footer_branch
                  %140 = sbr.rel target = $region45
                $region50: #{complex_huber_loss.2} parent=42 // loop_exit
                  _
              $region43: #{complex_huber_loss.2} parent=27 // pred_fallthru
                _
              // Predicated region
              $region51: #{complex_huber_loss.2} parent=27 // pred_check
                _
              $region52: #{complex_huber_loss.2} parent=27 // pred_check_branch
                %153 = sbr.rel target = $region54
              $region53: #{complex_huber_loss.2} parent=27 // pred_region
                _
              $region54: #{complex_huber_loss.2} parent=27 // pred_fallthru
                _
            $region28: #{complex_huber_loss.2} parent=23 // pred_fallthru
              _
            // Predicated region
            $region29: #{complex_huber_loss.2} parent=23 // pred_check
              _
            $region30: #{complex_huber_loss.2} parent=23 // pred_check_branch
              %123 = sbr.rel target = $region32
            $region31: #{complex_huber_loss.2} parent=23 // pred_region
              %s125 = ssub.s32 256, 1
              loop: start=0, step=1, limit=1
              $region33: #{complex_huber_loss.2} parent=31 // loop_pre_header
                _
              $region34: #{complex_huber_loss.2} parent=31 // loop_header
                %s127 = sphi 0, %s131
                %p128 = scmp.ge.s32.totalorder %s127, 1
                %s132 = sphi %s117, %s117
                %s133 = sphi %s115, %s115
              $region35: #{complex_huber_loss.2} parent=31 // loop_header_branch
                %130 = sbr.rel (%p128) target = $region39
              $region36: #{complex_huber_loss.2} parent=31 // loop_body
                %v134 = vld [vmem:[%s132] sm:%s125]
                %135 = vst [vmem:[%s133] sm:%s125] %v134
                %v136 = vld [vmem:[%s132 + $0x20] sm:%s125]
                %137 = vst [vmem:[%s133 + $0x8] sm:%s125] %v136
              $region37: #{complex_huber_loss.2} parent=31 // loop_footer
                %s131 = sadd.s32 1, %s127
              $region38: #{complex_huber_loss.2} parent=31 // loop_footer_branch
                %126 = sbr.rel target = $region34
              $region39: #{complex_huber_loss.2} parent=31 // loop_exit
                _
            $region32: #{complex_huber_loss.2} parent=23 // pred_fallthru
              _
          $region24: #{complex_huber_loss.2} parent=19 // pred_fallthru
            _
          %154 = vnop
        $region20: #{complex_huber_loss.2} parent=15 // pred_fallthru
          _
      $region16: #{complex_huber_loss.2} parent=5 // pred_fallthru
        _
      %p155 = scmp.le.s32.totalorder 1, %s12
      %p156 = scmp.lt.s32.totalorder %s12, 5
      %p157 = pnand %p155, %p156
      %p158 = pneg %p157
      // Predicated region
      $region55: #{complex_huber_loss.2} parent=5 // pred_check
        _
      $region56: #{complex_huber_loss.2} parent=5 // pred_check_branch
        %160 = sbr.rel (%p157) target = $region58
      $region57: #{complex_huber_loss.2} parent=5 // pred_region
        %s161 = ssub.s32 %s12, 1
        %s162 = sand.u32 %s25, 1
        %s163 = sand.u32 %s25, 1
        %s164 = smul.addr %s163, 16
        %s165 = scalar_lea.vmem [#allocation2], %s164
        // Predicated region
        $region59: #{complex_huber_loss.2} parent=57 // pred_check
          %p166 = pneg %p38
        $region60: #{complex_huber_loss.2} parent=57 // pred_check_branch
          %168 = sbr.rel (%p166) target = $region62
        $region61: #{complex_huber_loss.2} parent=57 // pred_region
          _
        $region62: #{complex_huber_loss.2} parent=57 // pred_fallthru
          _
        %s169 = sand.u32 %s25, 1
        %s170 = sand.u32 %s25, 1
        %s171 = smul.addr %s170, 16
        %s172 = scalar_lea.vmem [#allocation2], %s171
        %p173 = pneg %p38
        %p174 = pneg %p35
        %p175 = pneg %p64
        %p176 = pneg %p61
        %s177 = sand.u32 %s51, 1
        %s178 = scalar_lea.sflag [#allocation4], %s177
        %s179 = sand.u32 %s51, 1
        %s180 = smul.addr %s179, 8
        %s181 = scalar_lea.vmem [#allocation3], %s180
        %p182 = pneg %p90
        %p183 = pneg %p87
        %p184 = scmp.lt.s32.totalorder %s17, 3
        %s185 = scalar_select %p184, %s17, 3
        %s186 = smul.addr %s185, 8
        %s187 = scalar_lea.vmem %s2, %s186
        %p188 = scmp.lt.s32.totalorder %s17, 3
        %s189 = scalar_select %p188, %s17, 3
        %s190 = smul.addr %s189, 8
        %s191 = scalar_lea.vmem %s2, %s190
        %v192 = vld [vmem:[%s165] sm:$0xff]
        %s193 = scalar_lea.vmem %s165, 8 [#allocation2]
        %v194 = vld [vmem:[%s193] sm:$0xff]
        %v195 = vmul.f32 %v192, %v192
        %v196 = vmul.f32 %v194, %v194
        %v197 = vadd.f32 %v195, %v196
        %198 = vst [vmem:[%s181] sm:$0xff] %v197
        %v199 = vrsqrt.pop %v197
        %v200 = vmul.f32 %v199, %v197
        %v201 = vmul.f32 %v200, %v199
        %v202 = vmul.f32 0.5, %v201
        %v203 = vsub.f32 1.5, %v202
        %v204 = vmul.f32 %v199, %v203
        %v205 = vmul.f32 %v197, %v204
        %vm206 = vcmp.eq.f32.partialorder %v197, inf
        %v207 = vsel %vm206, %v197, %v205
        %vm208 = vcmp.eq.f32.partialorder %v197, 0.0
        %v209 = vand.u32 %v197, 2147483648
        %v210 = vsel %vm208, %v209, %v207
        %v211 = vadd.f32 %v210, 0.0
        %212 = vst [vmem:[%s191] sm:$0xff] %v211
        %s213 = sand.u32 %s51, 1
        %s214 = scalar_lea.sflag [#allocation4], %s213
        %s215 = sand.u32 %s51, 1
        %s216 = smul.addr %s215, 8
        %s217 = scalar_lea.vmem [#allocation3], %s216
        %p218 = scmp.lt.s32.totalorder %s17, 3
        %s219 = scalar_select %p218, %s17, 3
        %s220 = smul.addr %s219, 8
        %s221 = scalar_lea.vmem %s2, %s220
        // Predicated region
        $region63: #{complex_huber_loss.2} parent=57 // pred_check
          %p222 = pneg %p61
        $region64: #{complex_huber_loss.2} parent=57 // pred_check_branch
          %224 = sbr.rel (%p222) target = $region66
        $region65: #{complex_huber_loss.2} parent=57 // pred_region
          %226 = vsyncadd %s214, 0
          %s227 = smul.addr %s17, 8
          %s228 = scalar_lea.hbm %s1, %s227
          %s230 = sshll.u32 %s217, 4
          %s231 = int_to_ptr.vmem [resolvable:$true] %s230
          %s232 = sshll.u32 %s228, 4
          %s233 = int_to_ptr.hbm [resolvable:$true] %s232
          %235 = dma.vmem_to_hbm [thread:$0]  %s231, 128, %s233, %s214
        $region66: #{complex_huber_loss.2} parent=57 // pred_fallthru
          _
        // Predicated region
        $region67: #{complex_huber_loss.2} parent=57 // pred_check
          %p236 = pneg %p87
        $region68: #{complex_huber_loss.2} parent=57 // pred_check_branch
          %238 = sbr.rel (%p236) target = $region70
        $region69: #{complex_huber_loss.2} parent=57 // pred_region
          _
        $region70: #{complex_huber_loss.2} parent=57 // pred_fallthru
          _
      $region58: #{complex_huber_loss.2} parent=5 // pred_fallthru
        _
      %p239 = scmp.le.s32.totalorder 2, %s12
      // Predicated region
      $region71: #{complex_huber_loss.2} parent=5 // pred_check
        %p240 = pneg %p239
      $region72: #{complex_huber_loss.2} parent=5 // pred_check_branch
        %242 = sbr.rel (%p240) target = $region74
      $region73: #{complex_huber_loss.2} parent=5 // pred_region
        %s243 = ssub.s32 %s12, 2
        // Predicated region
        $region75: #{complex_huber_loss.2} parent=73 // pred_check
          %p244 = pneg %p67
        $region76: #{complex_huber_loss.2} parent=73 // pred_check_branch
          %246 = sbr.rel (%p244) target = $region78
        $region77: #{complex_huber_loss.2} parent=73 // pred_region
          %s247 = sand.u32 %s52, 1
          %s248 = scalar_lea.sflag [#allocation4], %s247
          %s249 = sand.u32 %s52, 1
          %s250 = smul.addr %s249, 8
          %s251 = scalar_lea.vmem [#allocation3], %s250
          %253 = dma.done %s248, 128
        $region78: #{complex_huber_loss.2} parent=73 // pred_fallthru
          _
        // Predicated region
        $region79: #{complex_huber_loss.2} parent=73 // pred_check
          %p254 = pneg %p93
        $region80: #{complex_huber_loss.2} parent=73 // pred_check_branch
          %256 = sbr.rel (%p254) target = $region82
        $region81: #{complex_huber_loss.2} parent=73 // pred_region
          %p257 = scmp.lt.s32.totalorder %s18, 3
          %s258 = scalar_select %p257, %s18, 3
          %s259 = smul.addr %s258, 8
          %s260 = scalar_lea.vmem %s2, %s259
        $region82: #{complex_huber_loss.2} parent=73 // pred_fallthru
          _
      $region74: #{complex_huber_loss.2} parent=5 // pred_fallthru
        _
    $region6: #{complex_huber_loss.2} parent=1 // loop_footer
      %s16 = sadd.s32 1, %s12
    $region7: #{complex_huber_loss.2} parent=1 // loop_footer_branch
      %11 = sbr.rel target = $region3
    $region8: #{complex_huber_loss.2} parent=1 // loop_exit
      _
    %261 = vsyncpa [#allocation4], 1
    %s262 = scalar_lea.sflag [#allocation4], 1
    %263 = vsyncpa %s262, 1

// kernel: complex_huber_loss.3
$region0: #{complex_huber_loss.3}
  #allocation0 [shape = 'u32[]', space=smem, size = 0x4, offset = 0x4, fixed_abs, tag = 'smem constant byte address 0x4 - core index']
  #allocation1 [shape = 'u32[72,128]{1,0:T(1,128)}', space=vmem, size = 0x9000, scoped, tag = 'internal scratch']
  #allocation2 [shape = 'f32[1]{0:T(128)S(6)}', space=smem, size = 0x200, scoped, tag = 'scoped memory for complex_huber_loss.3']
  %s0 = inlined_call_operand.<no memory space> [shape: f32[1], index: 0, kind: input, shape index: {}]
  %s1 = inlined_call_operand.hbm [shape: f32[32,128], index: 1, kind: input, shape index: {}, may-alias: {1,2}]
  %s2 = inlined_call_operand.hbm [shape: f32[32,128], index: 2, kind: output, shape index: {}, may-alias: {1,2}]
  %s3 = sld [smem:[#allocation0]]
  $region45: #{complex_huber_loss.3} parent=0
    _
  %s5 = ssub.s32 1, %s3
  %s6 = scalar_select 0, %s5, %s3
  %7 = sst [smem:[#allocation2]] %s0
  $region1: #{complex_huber_loss.3} parent=0
    #allocation3 [shape = 'u8[8192]{0}', space=vmem, size = 0x2000, scoped, tag = 'input window, operand 1']
    #allocation4 [shape = 's32[2]{0}', space=sflag, size = 0x8, scoped, tag = 'scoped memory for complex_huber_loss.3']
    #allocation5 [shape = 's32[2]{0}', space=sflag, size = 0x8, scoped, tag = 'scoped memory for complex_huber_loss.3']
    #allocation6 [shape = 'u8[8192]{0}', space=vmem, size = 0x2000, scoped, tag = 'output window, operand 0']
    %8 = vsyncpa [#allocation4], 0
    %s9 = scalar_lea.sflag [#allocation4], 1
    %10 = vsyncpa %s9, 0
    %11 = vsyncpa [#allocation5], 0
    %s12 = scalar_lea.sflag [#allocation5], 1
    %13 = vsyncpa %s12, 0
    loop: start=0, step=1, limit=6
    $region2: #{complex_huber_loss.3} parent=1 // loop_pre_header
      _
    $region3: #{complex_huber_loss.3} parent=1 // loop_header
      %s15 = sphi 0, %s19
      %p16 = scmp.ge.s32.totalorder %s15, 6
      %s23 = sphi 0, %s23
      %s25 = sphi 0, %s23
      %s26 = sphi 0, %s25
      %s40 = sphi 0, %s26
      %s46 = sphi 0, %s48
      %s49 = sphi 0, %s46
      %s50 = sphi 0, %s49
      %s66 = sphi 0, %s50
      %s72 = sphi 0, %s74
      %s75 = sphi 0, %s72
      %s76 = sphi 0, %s75
      %s92 = sphi 0, %s76
    $region4: #{complex_huber_loss.3} parent=1 // loop_header_branch
      %18 = sbr.rel (%p16) target = $region8
    $region5: #{complex_huber_loss.3} parent=1 // loop_body
      %s20 = ssub.s32 %s15, 1
      %s21 = ssub.s32 %s15, 2
      %s22 = sadd.s32 %s15, 1
      %s24 = sadd.s32 %s23, 1
      %p27 = scmp.eq.s32.totalorder %s15, 3
      %p28 = scmp.ne.s32.totalorder %s23, %s25
      %p29 = scmp.eq.s32.totalorder %s15, 0
      %p30 = por %p28, %p29
      %p31 = scmp.ne.s32.totalorder %s23, %s25
      %p32 = scmp.eq.s32.totalorder %s20, 3
      %p33 = por %p31, %p32
      %p34 = scmp.ne.s32.totalorder %s25, %s26
      %p35 = scmp.eq.s32.totalorder %s20, 0
      %p36 = por %p34, %p35
      %p37 = scmp.ne.s32.totalorder %s25, %s26
      %p38 = scmp.eq.s32.totalorder %s21, 3
      %p39 = por %p37, %p38
      %p41 = scmp.ne.s32.totalorder %s26, %s40
      %p42 = scmp.eq.s32.totalorder %s21, 0
      %p43 = por %p41, %p42
      %s44 = ssub.s32 %s15, %s22
      %p45 = scmp.eq.s32.totalorder %s44, 0
      %s47 = sadd.s32 %s46, 1
      %s48 = scalar_select %p45, %s46, %s47
      %p51 = pneg %p45
      %p52 = scmp.eq.s32.totalorder %s15, 3
      %p53 = por %p51, %p52
      %p54 = scmp.ne.s32.totalorder %s46, %s49
      %p55 = scmp.eq.s32.totalorder %s15, 0
      %p56 = por %p54, %p55
      %p57 = scmp.ne.s32.totalorder %s46, %s49
      %p58 = scmp.eq.s32.totalorder %s20, 3
      %p59 = por %p57, %p58
      %p60 = scmp.ne.s32.totalorder %s49, %s50
      %p61 = scmp.eq.s32.totalorder %s20, 0
      %p62 = por %p60, %p61
      %p63 = scmp.ne.s32.totalorder %s49, %s50
      %p64 = scmp.eq.s32.totalorder %s21, 3
      %p65 = por %p63, %p64
      %p67 = scmp.ne.s32.totalorder %s50, %s66
      %p68 = scmp.eq.s32.totalorder %s21, 0
      %p69 = por %p67, %p68
      %s70 = ssub.s32 %s15, %s22
      %p71 = scmp.eq.s32.totalorder %s70, 0
      %s73 = sadd.s32 %s72, 1
      %s74 = scalar_select %p71, %s72, %s73
      %p77 = pneg %p71
      %p78 = scmp.eq.s32.totalorder %s15, 3
      %p79 = por %p77, %p78
      %p80 = scmp.ne.s32.totalorder %s72, %s75
      %p81 = scmp.eq.s32.totalorder %s15, 0
      %p82 = por %p80, %p81
      %p83 = scmp.ne.s32.totalorder %s72, %s75
      %p84 = scmp.eq.s32.totalorder %s20, 3
      %p85 = por %p83, %p84
      %p86 = scmp.ne.s32.totalorder %s75, %s76
      %p87 = scmp.eq.s32.totalorder %s20, 0
      %p88 = por %p86, %p87
      %p89 = scmp.ne.s32.totalorder %s75, %s76
      %p90 = scmp.eq.s32.totalorder %s21, 3
      %p91 = por %p89, %p90
      %p93 = scmp.ne.s32.totalorder %s76, %s92
      %p94 = scmp.eq.s32.totalorder %s21, 0
      %p95 = por %p93, %p94
      %p96 = scmp.le.s32.totalorder 1, %s15
      %p97 = scmp.lt.s32.totalorder %s15, 5
      %p98 = pnand %p96, %p97
      %p99 = pneg %p98
      // Predicated region
      $region9: #{complex_huber_loss.3} parent=5 // pred_check
        _
      $region10: #{complex_huber_loss.3} parent=5 // pred_check_branch
        %101 = sbr.rel (%p98) target = $region12
      $region11: #{complex_huber_loss.3} parent=5 // pred_region
        %s102 = ssub.s32 %s15, 1
        // Predicated region
        $region13: #{complex_huber_loss.3} parent=11 // pred_check
          %p103 = pneg %p36
        $region14: #{complex_huber_loss.3} parent=11 // pred_check_branch
          %105 = sbr.rel (%p103) target = $region16
        $region15: #{complex_huber_loss.3} parent=11 // pred_region
          _
        $region16: #{complex_huber_loss.3} parent=11 // pred_fallthru
          _
      $region12: #{complex_huber_loss.3} parent=5 // pred_fallthru
        _
      %p106 = scmp.lt.s32.totalorder %s15, 4
      // Predicated region
      $region17: #{complex_huber_loss.3} parent=5 // pred_check
        %p107 = pneg %p106
      $region18: #{complex_huber_loss.3} parent=5 // pred_check_branch
        %109 = sbr.rel (%p107) target = $region20
      $region19: #{complex_huber_loss.3} parent=5 // pred_region
        // Predicated region
        $region21: #{complex_huber_loss.3} parent=19 // pred_check
          %p110 = pneg %p56
        $region22: #{complex_huber_loss.3} parent=19 // pred_check_branch
          %112 = sbr.rel (%p110) target = $region24
        $region23: #{complex_huber_loss.3} parent=19 // pred_region
          %s113 = sand.u32 %s46, 1
          %s114 = scalar_lea.sflag [#allocation4], %s113
          %s115 = sand.u32 %s46, 1
          %s116 = smul.addr %s115, 8
          %s117 = scalar_lea.vmem [#allocation3], %s116
          %119 = vsyncadd %s114, 0
          %s120 = smul.addr %s15, 8
          %s121 = scalar_lea.hbm %s1, %s120
          %s123 = sshll.u32 %s121, 4
          %s124 = int_to_ptr.hbm [resolvable:$true] %s123
          %s125 = sshll.u32 %s117, 4
          %s126 = int_to_ptr.vmem [resolvable:$true] %s125
          %128 = dma.hbm_to_vmem [thread:$0]  %s124, 128, %s126, %s114
        $region24: #{complex_huber_loss.3} parent=19 // pred_fallthru
          _
      $region20: #{complex_huber_loss.3} parent=5 // pred_fallthru
        _
      %p129 = scmp.le.s32.totalorder 1, %s15
      %p130 = scmp.lt.s32.totalorder %s15, 5
      %p131 = pnand %p129, %p130
      %p132 = pneg %p131
      // Predicated region
      $region25: #{complex_huber_loss.3} parent=5 // pred_check
        _
      $region26: #{complex_huber_loss.3} parent=5 // pred_check_branch
        %134 = sbr.rel (%p131) target = $region28
      $region27: #{complex_huber_loss.3} parent=5 // pred_region
        %s135 = ssub.s32 %s15, 1
        %s136 = sand.u32 %s49, 1
        %s137 = scalar_lea.sflag [#allocation4], %s136
        %s138 = sand.u32 %s49, 1
        %s139 = smul.addr %s138, 8
        %s140 = scalar_lea.vmem [#allocation3], %s139
        // Predicated region
        $region29: #{complex_huber_loss.3} parent=27 // pred_check
          %p141 = pneg %p62
        $region30: #{complex_huber_loss.3} parent=27 // pred_check_branch
          %143 = sbr.rel (%p141) target = $region32
        $region31: #{complex_huber_loss.3} parent=27 // pred_region
          %145 = dma.done %s137, 128
        $region32: #{complex_huber_loss.3} parent=27 // pred_fallthru
          _
        %p146 = pneg %p36
        %p147 = pneg %p33
        %s148 = sand.u32 %s49, 1
        %s149 = scalar_lea.sflag [#allocation4], %s148
        %s150 = sand.u32 %s49, 1
        %s151 = smul.addr %s150, 8
        %s152 = scalar_lea.vmem [#allocation3], %s151
        %p153 = pneg %p62
        %p154 = pneg %p59
        %p155 = pneg %p88
        %p156 = pneg %p85
        %s157 = sand.u32 %s75, 1
        %s158 = scalar_lea.sflag [#allocation5], %s157
        %s159 = sand.u32 %s75, 1
        %s160 = smul.addr %s159, 8
        %s161 = scalar_lea.vmem [#allocation6], %s160
        %s162 = sld [smem:[#allocation2]]
        %s163 = smul.f32 %s162, 0.00024414063
        %s164 = ssub.f32 %s163, 0.5
        %v165 = vld [vmem:[%s140] sm:$0xff]
        %vm166 = vcmp.lt.f32.partialorder %v165, 1.0
        %v167 = vstv %s164
        %v168 = vsel %vm166, %v165, %v167
        %169 = vst [vmem:[%s161] sm:$0xff] %v168
        %s170 = sand.u32 %s75, 1
        %s171 = scalar_lea.sflag [#allocation5], %s170
        %s172 = sand.u32 %s75, 1
        %s173 = smul.addr %s172, 8
        %s174 = scalar_lea.vmem [#allocation6], %s173
        // Predicated region
        $region33: #{complex_huber_loss.3} parent=27 // pred_check
          %p175 = pneg %p85
        $region34: #{complex_huber_loss.3} parent=27 // pred_check_branch
          %177 = sbr.rel (%p175) target = $region36
        $region35: #{complex_huber_loss.3} parent=27 // pred_region
          %179 = vsyncadd %s171, 0
          %s180 = smul.addr %s20, 8
          %s181 = scalar_lea.hbm %s2, %s180
          %s183 = sshll.u32 %s174, 4
          %s184 = int_to_ptr.vmem [resolvable:$true] %s183
          %s185 = sshll.u32 %s181, 4
          %s186 = int_to_ptr.hbm [resolvable:$true] %s185
          %188 = dma.vmem_to_hbm [thread:$0]  %s184, 128, %s186, %s171
        $region36: #{complex_huber_loss.3} parent=27 // pred_fallthru
          _
      $region28: #{complex_huber_loss.3} parent=5 // pred_fallthru
        _
      %p189 = scmp.le.s32.totalorder 2, %s15
      // Predicated region
      $region37: #{complex_huber_loss.3} parent=5 // pred_check
        %p190 = pneg %p189
      $region38: #{complex_huber_loss.3} parent=5 // pred_check_branch
        %192 = sbr.rel (%p190) target = $region40
      $region39: #{complex_huber_loss.3} parent=5 // pred_region
        %s193 = ssub.s32 %s15, 2
        // Predicated region
        $region41: #{complex_huber_loss.3} parent=39 // pred_check
          %p194 = pneg %p91
        $region42: #{complex_huber_loss.3} parent=39 // pred_check_branch
          %196 = sbr.rel (%p194) target = $region44
        $region43: #{complex_huber_loss.3} parent=39 // pred_region
          %s197 = sand.u32 %s76, 1
          %s198 = scalar_lea.sflag [#allocation5], %s197
          %s199 = sand.u32 %s76, 1
          %s200 = smul.addr %s199, 8
          %s201 = scalar_lea.vmem [#allocation6], %s200
          %203 = dma.done %s198, 128
        $region44: #{complex_huber_loss.3} parent=39 // pred_fallthru
          _
      $region40: #{complex_huber_loss.3} parent=5 // pred_fallthru
        _
    $region6: #{complex_huber_loss.3} parent=1 // loop_footer
      %s19 = sadd.s32 1, %s15
    $region7: #{complex_huber_loss.3} parent=1 // loop_footer_branch
      %14 = sbr.rel target = $region3
    $region8: #{complex_huber_loss.3} parent=1 // loop_exit
      _
    %204 = vsyncpa [#allocation4], 1
    %s205 = scalar_lea.sflag [#allocation4], 1
    %206 = vsyncpa %s205, 1
    %207 = vsyncpa [#allocation5], 1
    %s208 = scalar_lea.sflag [#allocation5], 1
    %209 = vsyncpa %s208, 1

</llo_original>
